<compile_context>
chip_gen: v5e
topology: v5e:2x2
jax: 0.10.0
libtpu: 0.0.40
codegen_flags: <defaults>
</compile_context>

<pallas_src>
import jax
import jax.numpy as jnp
from jax.experimental import pallas as pl
from jax.experimental.pallas import tpu as pltpu

HIDDEN = 5
GATE_ROWS = 8                 # each gate padded from HIDDEN=5 to 8 sublanes (one f32 vreg group)
NGATES = 4
GROWS = NGATES * GATE_ROWS    # 32
LANES = 128
P_ROWS = 112                  # packed parameter buffer rows (multiple of 8)

# Packed parameter buffer P (P_ROWS, 128) f32 layout:
#   rows   0..31, cols 0..7 : W_hh in transposed-recurrence form (gates = W_pad @ h),
#                             gate order [i,f,o,g], each gate padded 5->8 rows, cols>=5 zero
#   rows  32..63            : w_ih per gate-row, replicated across all 128 lanes
#   rows  64..95            : (b_ih + b_hh) per gate-row, replicated across lanes
#   rows  96..103           : fc weight per hidden row (rows >= HIDDEN zero), lane-replicated
#   row  104                : fc bias, lane-replicated
#   rows 105..111           : zero pad


def lstm_fc_kernel(x_ref, p_ref, out_ref):
    # x_ref  : (T, 128) f32, x_ref[t, b] = x[b, t, 0]  (batch along lanes, pad lanes zero)
    # p_ref  : (P_ROWS, 128) f32 packed parameters (layout above)
    # out_ref: (1, 128) f32, out_ref[0, b] = fc output for batch b (lane-dense store)
    T = x_ref.shape[0]

    # Loop-invariant parameter views, hoisted once.  Recurrent weight cast to bf16 -> single-pass
    # MXU matmul; accumulation stays f32.
    w_hh = p_ref[0:GROWS, 0:GATE_ROWS].astype(jnp.bfloat16)   # (32, 8)
    w_ih = p_ref[GROWS:2 * GROWS, :]                          # (32, 128) lane-replicated
    bias = p_ref[2 * GROWS:3 * GROWS, :]                      # (32, 128) lane-replicated
    w_fc = p_ref[3 * GROWS:3 * GROWS + 8, :]                  # (8, 128)
    b_fc = p_ref[3 * GROWS + 8:3 * GROWS + 9, :]              # (1, 128)

    # State in transposed layout: hidden units along sublanes (rows 0..4, pad rows 5..7 stay
    # exactly zero), batch along lanes.  Elementwise math and state stay f32.
    h = jnp.zeros((GATE_ROWS, LANES), jnp.float32)
    c = jnp.zeros((GATE_ROWS, LANES), jnp.float32)

    # Fully unrolled recurrence (T is small and static).  The input contribution xw_t is computed
    # in-kernel; it has no dependence on h/c, so the scheduler can hoist/overlap it off the serial
    # recurrence path.  Computing it per unrolled step (instead of materializing all T blocks up
    # front) keeps vreg pressure low.
    for t in range(T):
        x_t = jnp.broadcast_to(x_ref[t:t + 1, :], (GROWS, LANES))     # (32,128)
        xw_t = x_t * w_ih + bias                                      # (32,128), pad rows = 0

        # Recurrent term on the MXU: (32,8)bf16 @ (8,128)bf16 -> (32,128) f32.  W_hh is
        # loop-invariant and hoisted above.
        # TODO(synk): verify in the bundle dump that Mosaic keeps the weight latched across the
        # unrolled steps; if not, drive the MXU explicitly via pltpu.matmul_push_rhs/acc_lhs/pop.
        gates = xw_t + jnp.dot(w_hh, h.astype(jnp.bfloat16),
                               preferred_element_type=jnp.float32)    # (32,128)

        # Gate blocks are 8-sublane aligned -> every slice below is a free vreg view.
        sig = jax.nn.sigmoid(gates[0:3 * GATE_ROWS, :])   # i, f, o in one region (3 vregs)
        g_act = jnp.tanh(gates[3 * GATE_ROWS:, :])        # g (1 vreg)
        i_g = sig[0:GATE_ROWS, :]
        f_g = sig[GATE_ROWS:2 * GATE_ROWS, :]
        o_g = sig[2 * GATE_ROWS:3 * GATE_ROWS, :]
        c = f_g * c + i_g * g_act
        h = o_g * jnp.tanh(c)

    # Final FC: relu(h) . w_fc + b_fc as a VPU multiply + one sublane reduce; lane-dense store.
    out = jnp.sum(jnp.maximum(h, 0.0) * w_fc, axis=0, keepdims=True) + b_fc
    out_ref[...] = out


def _reorder_pad_gate_rows(w):
    """(4H, C) in PyTorch gate order (i, f, g, o) -> (32, C) in order (i, f, o, g),
    each gate block padded from HIDDEN to 8 rows with zeros (zero pad is load-bearing)."""
    H = HIDDEN
    C = w.shape[1]
    blocks = [w[0:H], w[H:2 * H], w[3 * H:4 * H], w[2 * H:3 * H]]   # i, f, o, g
    out = jnp.zeros((GROWS, C), jnp.float32)
    for gi, blk in enumerate(blocks):
        out = out.at[gi * GATE_ROWS:gi * GATE_ROWS + H, :].set(blk.astype(jnp.float32))
    return out


def lstm_forward(x_btc, w_ih, w_hh, b_ih, b_hh, w_fc, b_fc):
    """x_btc: (B, T, 1) float32, PyTorch batch-first layout. Returns (B, 1)."""
    B, T, C = x_btc.shape
    assert C == 1
    assert B <= LANES, "batch is laid out along lanes; tile with a grid for B > 128"
    H = HIDDEN

    # Raw input, transposed so batch is along lanes: (T, 128).  (No xw precompute in the wrapper:
    # the input contribution is built inside the kernel.)
    x_tb = jnp.zeros((T, LANES), jnp.float32)
    x_tb = x_tb.at[:, :B].set(jnp.transpose(x_btc[:, :, 0]).astype(jnp.float32))

    # One packed parameter buffer (~56 KB total, vs ~278 KB of mostly zeros before).
    w_hh_p = _reorder_pad_gate_rows(w_hh.astype(jnp.float32))                             # (32, H)
    w_ih_p = _reorder_pad_gate_rows(w_ih.reshape(4 * H, 1).astype(jnp.float32))           # (32, 1)
    bias_p = _reorder_pad_gate_rows((b_ih + b_hh).reshape(4 * H, 1).astype(jnp.float32))  # (32, 1)

    P = jnp.zeros((P_ROWS, LANES), jnp.float32)
    P = P.at[0:GROWS, 0:H].set(w_hh_p)
    P = P.at[GROWS:2 * GROWS, :].set(jnp.broadcast_to(w_ih_p, (GROWS, LANES)))
    P = P.at[2 * GROWS:3 * GROWS, :].set(jnp.broadcast_to(bias_p, (GROWS, LANES)))
    P = P.at[3 * GROWS:3 * GROWS + H, :].set(
        jnp.broadcast_to(w_fc.reshape(H, 1).astype(jnp.float32), (H, LANES)))
    P = P.at[3 * GROWS + 8, :].set(b_fc.reshape(()).astype(jnp.float32))

    vmem = pl.BlockSpec(memory_space=pltpu.MemorySpace.VMEM)
    # Single-instance kernel (no grid): the recurrence is serial and everything fits in a few
    # vregs (<0.1 MiB VMEM).  For large batches, add a 1-D grid over 128-lane batch tiles with
    # compiler_params dimension_semantics=("parallel",) so both v7x TensorCores are used.
    out = pl.pallas_call(
        lstm_fc_kernel,
        out_shape=jax.ShapeDtypeStruct((1, LANES), jnp.float32),
        in_specs=[vmem, vmem],
        out_specs=vmem,
    )(x_tb, P)
    return jnp.transpose(out[:, :B])   # (B, 1)


def lstm_forward_ref(x_btc, w_ih, w_hh, b_ih, b_hh, w_fc, b_fc):
    """Pure-JAX reference identical to the PyTorch module semantics."""
    B, T, _ = x_btc.shape
    H = HIDDEN
    h = jnp.zeros((B, H), jnp.float32)
    c = jnp.zeros((B, H), jnp.float32)
    for t in range(T):
        x_t = x_btc[:, t, :]                                    # (B, 1)
        gates = x_t @ w_ih.T + h @ w_hh.T + b_ih + b_hh         # (B, 4H), order i, f, g, o
        i = jax.nn.sigmoid(gates[:, 0:H])
        f = jax.nn.sigmoid(gates[:, H:2 * H])
        g = jnp.tanh(gates[:, 2 * H:3 * H])
        o = jax.nn.sigmoid(gates[:, 3 * H:4 * H])
        c = f * c + i * g
        h = o * jnp.tanh(c)
    return jax.nn.relu(h) @ w_fc.T + b_fc


if __name__ == "__main__":
    key = jax.random.PRNGKey(0)
    kx, k1, k2, k3, k4, k5, k6 = jax.random.split(key, 7)

    B, T = 2, 8
    H = HIDDEN
    bound = 1.0 / jnp.sqrt(jnp.float32(H))   # PyTorch default uniform init range

    x = jax.random.normal(kx, (B, T, 1), dtype=jnp.float32)

    w_ih = jax.random.uniform(k1, (4 * H, 1), jnp.float32, -bound, bound)
    w_hh = jax.random.uniform(k2, (4 * H, H), jnp.float32, -bound, bound)
    b_ih = jax.random.uniform(k3, (4 * H,), jnp.float32, -bound, bound)
    b_hh = jax.random.uniform(k4, (4 * H,), jnp.float32, -bound, bound)
    w_fc = jax.random.uniform(k5, (1, H), jnp.float32, -bound, bound)
    b_fc = jax.random.uniform(k6, (1,), jnp.float32, -bound, bound)

    out = lstm_forward(x, w_ih, w_hh, b_ih, b_hh, w_fc, b_fc)
    out = jax.block_until_ready(out)

    ref = lstm_forward_ref(x, w_ih, w_hh, b_ih, b_hh, w_fc, b_fc)
    assert out.shape == (B, 1)
    assert jnp.allclose(out, ref, atol=1e-2, rtol=1e-2)

    print("KERNEL_OK")
</pallas_src>

<mosaic_0001>
module attributes {stable_mosaic.version = 11 : i64} {
  func.func @lstm_fc_kernel(%arg0: memref<8x128xf32, #tpu.memory_space<vmem>>, %arg1: memref<112x128xf32, #tpu.memory_space<vmem>>, %arg2: memref<1x128xf32, #tpu.memory_space<vmem>>) attributes {dimension_semantics = [], scalar_prefetch = 0 : i64, scratch_operands = 0 : i64, tpu.core_type = #tpu.core_type<tc>} {
    %c0 = arith.constant 0 : index
    %c0_0 = arith.constant 0 : index
    %0 = vector.load %arg1[%c0, %c0_0] : memref<112x128xf32, #tpu.memory_space<vmem>>, vector<32x8xf32>
    %1 = arith.truncf %0 : vector<32x8xf32> to vector<32x8xbf16>
    %c32 = arith.constant 32 : index
    %c0_1 = arith.constant 0 : index
    %2 = vector.load %arg1[%c32, %c0_1] : memref<112x128xf32, #tpu.memory_space<vmem>>, vector<32x128xf32>
    %c64 = arith.constant 64 : index
    %c0_2 = arith.constant 0 : index
    %3 = vector.load %arg1[%c64, %c0_2] : memref<112x128xf32, #tpu.memory_space<vmem>>, vector<32x128xf32>
    %c96 = arith.constant 96 : index
    %c0_3 = arith.constant 0 : index
    %4 = vector.load %arg1[%c96, %c0_3] : memref<112x128xf32, #tpu.memory_space<vmem>>, vector<8x128xf32>
    %c104 = arith.constant 104 : index
    %c0_4 = arith.constant 0 : index
    %5 = vector.load %arg1[%c104, %c0_4] : memref<112x128xf32, #tpu.memory_space<vmem>>, vector<1x128xf32>
    %cst = arith.constant 0.000000e+00 : f32
    %6 = vector.broadcast %cst : f32 to vector<8x128xf32>
    %cst_5 = arith.constant 0.000000e+00 : f32
    %7 = vector.broadcast %cst_5 : f32 to vector<8x128xf32>
    %c0_6 = arith.constant 0 : index
    %c0_7 = arith.constant 0 : index
    %8 = vector.load %arg0[%c0_6, %c0_7] : memref<8x128xf32, #tpu.memory_space<vmem>>, vector<1x128xf32>
    %9 = vector.shape_cast %8 : vector<1x128xf32> to vector<1x128xf32>
    %10 = vector.broadcast %9 : vector<1x128xf32> to vector<32x128xf32>
    %11 = arith.mulf %10, %2 : vector<32x128xf32>
    %12 = arith.addf %11, %3 : vector<32x128xf32>
    %13 = arith.truncf %6 : vector<8x128xf32> to vector<8x128xbf16>
    %cst_8 = arith.constant dense<0.000000e+00> : vector<32x128xf32>
    %14 = tpu.matmul %1, %13, %cst_8 {dimension_numbers = #tpu.dot_dimension_numbers<[1], [0], [0], [1], [0, 0, 1, 1], [], []>} : vector<32x8xbf16>, vector<8x128xbf16>, vector<32x128xf32> -> vector<32x128xf32>
    %15 = arith.addf %12, %14 : vector<32x128xf32>
    %16 = vector.extract_strided_slice %15 {offsets = [0, 0], sizes = [24, 128], strides = [1, 1]} : vector<32x128xf32> to vector<24x128xf32>
    %17 = arith.negf %16 : vector<24x128xf32>
    %18 = math.exp %17 : vector<24x128xf32>
    %cst_9 = arith.constant 1.000000e+00 : f32
    %19 = vector.broadcast %cst_9 : f32 to vector<24x128xf32>
    %20 = arith.addf %19, %18 : vector<24x128xf32>
    %21 = arith.divf %19, %20 : vector<24x128xf32>
    %22 = vector.extract_strided_slice %15 {offsets = [24, 0], sizes = [8, 128], strides = [1, 1]} : vector<32x128xf32> to vector<8x128xf32>
    %23 = math.tanh %22 : vector<8x128xf32>
    %24 = vector.extract_strided_slice %21 {offsets = [0, 0], sizes = [8, 128], strides = [1, 1]} : vector<24x128xf32> to vector<8x128xf32>
    %25 = vector.extract_strided_slice %21 {offsets = [8, 0], sizes = [8, 128], strides = [1, 1]} : vector<24x128xf32> to vector<8x128xf32>
    %26 = vector.extract_strided_slice %21 {offsets = [16, 0], sizes = [8, 128], strides = [1, 1]} : vector<24x128xf32> to vector<8x128xf32>
    %27 = arith.mulf %25, %7 : vector<8x128xf32>
    %28 = arith.mulf %24, %23 : vector<8x128xf32>
    %29 = arith.addf %27, %28 : vector<8x128xf32>
    %30 = math.tanh %29 : vector<8x128xf32>
    %31 = arith.mulf %26, %30 : vector<8x128xf32>
    %c1 = arith.constant 1 : index
    %c0_10 = arith.constant 0 : index
    %32 = vector.load %arg0[%c1, %c0_10] : memref<8x128xf32, #tpu.memory_space<vmem>>, vector<1x128xf32>
    %33 = vector.shape_cast %32 : vector<1x128xf32> to vector<1x128xf32>
    %34 = vector.broadcast %33 : vector<1x128xf32> to vector<32x128xf32>
    %35 = arith.mulf %34, %2 : vector<32x128xf32>
    %36 = arith.addf %35, %3 : vector<32x128xf32>
    %37 = arith.truncf %31 : vector<8x128xf32> to vector<8x128xbf16>
    %cst_11 = arith.constant dense<0.000000e+00> : vector<32x128xf32>
    %38 = tpu.matmul %1, %37, %cst_11 {dimension_numbers = #tpu.dot_dimension_numbers<[1], [0], [0], [1], [0, 0, 1, 1], [], []>} : vector<32x8xbf16>, vector<8x128xbf16>, vector<32x128xf32> -> vector<32x128xf32>
    %39 = arith.addf %36, %38 : vector<32x128xf32>
    %40 = vector.extract_strided_slice %39 {offsets = [0, 0], sizes = [24, 128], strides = [1, 1]} : vector<32x128xf32> to vector<24x128xf32>
    %41 = arith.negf %40 : vector<24x128xf32>
    %42 = math.exp %41 : vector<24x128xf32>
    %cst_12 = arith.constant 1.000000e+00 : f32
    %43 = vector.broadcast %cst_12 : f32 to vector<24x128xf32>
    %44 = arith.addf %43, %42 : vector<24x128xf32>
    %45 = arith.divf %43, %44 : vector<24x128xf32>
    %46 = vector.extract_strided_slice %39 {offsets = [24, 0], sizes = [8, 128], strides = [1, 1]} : vector<32x128xf32> to vector<8x128xf32>
    %47 = math.tanh %46 : vector<8x128xf32>
    %48 = vector.extract_strided_slice %45 {offsets = [0, 0], sizes = [8, 128], strides = [1, 1]} : vector<24x128xf32> to vector<8x128xf32>
    %49 = vector.extract_strided_slice %45 {offsets = [8, 0], sizes = [8, 128], strides = [1, 1]} : vector<24x128xf32> to vector<8x128xf32>
    %50 = vector.extract_strided_slice %45 {offsets = [16, 0], sizes = [8, 128], strides = [1, 1]} : vector<24x128xf32> to vector<8x128xf32>
    %51 = arith.mulf %49, %29 : vector<8x128xf32>
    %52 = arith.mulf %48, %47 : vector<8x128xf32>
    %53 = arith.addf %51, %52 : vector<8x128xf32>
    %54 = math.tanh %53 : vector<8x128xf32>
    %55 = arith.mulf %50, %54 : vector<8x128xf32>
    %c2 = arith.constant 2 : index
    %c0_13 = arith.constant 0 : index
    %56 = vector.load %arg0[%c2, %c0_13] : memref<8x128xf32, #tpu.memory_space<vmem>>, vector<1x128xf32>
    %57 = vector.shape_cast %56 : vector<1x128xf32> to vector<1x128xf32>
    %58 = vector.broadcast %57 : vector<1x128xf32> to vector<32x128xf32>
    %59 = arith.mulf %58, %2 : vector<32x128xf32>
    %60 = arith.addf %59, %3 : vector<32x128xf32>
    %61 = arith.truncf %55 : vector<8x128xf32> to vector<8x128xbf16>
    %cst_14 = arith.constant dense<0.000000e+00> : vector<32x128xf32>
    %62 = tpu.matmul %1, %61, %cst_14 {dimension_numbers = #tpu.dot_dimension_numbers<[1], [0], [0], [1], [0, 0, 1, 1], [], []>} : vector<32x8xbf16>, vector<8x128xbf16>, vector<32x128xf32> -> vector<32x128xf32>
    %63 = arith.addf %60, %62 : vector<32x128xf32>
    %64 = vector.extract_strided_slice %63 {offsets = [0, 0], sizes = [24, 128], strides = [1, 1]} : vector<32x128xf32> to vector<24x128xf32>
    %65 = arith.negf %64 : vector<24x128xf32>
    %66 = math.exp %65 : vector<24x128xf32>
    %cst_15 = arith.constant 1.000000e+00 : f32
    %67 = vector.broadcast %cst_15 : f32 to vector<24x128xf32>
    %68 = arith.addf %67, %66 : vector<24x128xf32>
    %69 = arith.divf %67, %68 : vector<24x128xf32>
    %70 = vector.extract_strided_slice %63 {offsets = [24, 0], sizes = [8, 128], strides = [1, 1]} : vector<32x128xf32> to vector<8x128xf32>
    %71 = math.tanh %70 : vector<8x128xf32>
    %72 = vector.extract_strided_slice %69 {offsets = [0, 0], sizes = [8, 128], strides = [1, 1]} : vector<24x128xf32> to vector<8x128xf32>
    %73 = vector.extract_strided_slice %69 {offsets = [8, 0], sizes = [8, 128], strides = [1, 1]} : vector<24x128xf32> to vector<8x128xf32>
    %74 = vector.extract_strided_slice %69 {offsets = [16, 0], sizes = [8, 128], strides = [1, 1]} : vector<24x128xf32> to vector<8x128xf32>
    %75 = arith.mulf %73, %53 : vector<8x128xf32>
    %76 = arith.mulf %72, %71 : vector<8x128xf32>
    %77 = arith.addf %75, %76 : vector<8x128xf32>
    %78 = math.tanh %77 : vector<8x128xf32>
    %79 = arith.mulf %74, %78 : vector<8x128xf32>
    %c3 = arith.constant 3 : index
    %c0_16 = arith.constant 0 : index
    %80 = vector.load %arg0[%c3, %c0_16] : memref<8x128xf32, #tpu.memory_space<vmem>>, vector<1x128xf32>
    %81 = vector.shape_cast %80 : vector<1x128xf32> to vector<1x128xf32>
    %82 = vector.broadcast %81 : vector<1x128xf32> to vector<32x128xf32>
    %83 = arith.mulf %82, %2 : vector<32x128xf32>
    %84 = arith.addf %83, %3 : vector<32x128xf32>
    %85 = arith.truncf %79 : vector<8x128xf32> to vector<8x128xbf16>
    %cst_17 = arith.constant dense<0.000000e+00> : vector<32x128xf32>
    %86 = tpu.matmul %1, %85, %cst_17 {dimension_numbers = #tpu.dot_dimension_numbers<[1], [0], [0], [1], [0, 0, 1, 1], [], []>} : vector<32x8xbf16>, vector<8x128xbf16>, vector<32x128xf32> -> vector<32x128xf32>
    %87 = arith.addf %84, %86 : vector<32x128xf32>
    %88 = vector.extract_strided_slice %87 {offsets = [0, 0], sizes = [24, 128], strides = [1, 1]} : vector<32x128xf32> to vector<24x128xf32>
    %89 = arith.negf %88 : vector<24x128xf32>
    %90 = math.exp %89 : vector<24x128xf32>
    %cst_18 = arith.constant 1.000000e+00 : f32
    %91 = vector.broadcast %cst_18 : f32 to vector<24x128xf32>
    %92 = arith.addf %91, %90 : vector<24x128xf32>
    %93 = arith.divf %91, %92 : vector<24x128xf32>
    %94 = vector.extract_strided_slice %87 {offsets = [24, 0], sizes = [8, 128], strides = [1, 1]} : vector<32x128xf32> to vector<8x128xf32>
    %95 = math.tanh %94 : vector<8x128xf32>
    %96 = vector.extract_strided_slice %93 {offsets = [0, 0], sizes = [8, 128], strides = [1, 1]} : vector<24x128xf32> to vector<8x128xf32>
    %97 = vector.extract_strided_slice %93 {offsets = [8, 0], sizes = [8, 128], strides = [1, 1]} : vector<24x128xf32> to vector<8x128xf32>
    %98 = vector.extract_strided_slice %93 {offsets = [16, 0], sizes = [8, 128], strides = [1, 1]} : vector<24x128xf32> to vector<8x128xf32>
    %99 = arith.mulf %97, %77 : vector<8x128xf32>
    %100 = arith.mulf %96, %95 : vector<8x128xf32>
    %101 = arith.addf %99, %100 : vector<8x128xf32>
    %102 = math.tanh %101 : vector<8x128xf32>
    %103 = arith.mulf %98, %102 : vector<8x128xf32>
    %c4 = arith.constant 4 : index
    %c0_19 = arith.constant 0 : index
    %104 = vector.load %arg0[%c4, %c0_19] : memref<8x128xf32, #tpu.memory_space<vmem>>, vector<1x128xf32>
    %105 = vector.shape_cast %104 : vector<1x128xf32> to vector<1x128xf32>
    %106 = vector.broadcast %105 : vector<1x128xf32> to vector<32x128xf32>
    %107 = arith.mulf %106, %2 : vector<32x128xf32>
    %108 = arith.addf %107, %3 : vector<32x128xf32>
    %109 = arith.truncf %103 : vector<8x128xf32> to vector<8x128xbf16>
    %cst_20 = arith.constant dense<0.000000e+00> : vector<32x128xf32>
    %110 = tpu.matmul %1, %109, %cst_20 {dimension_numbers = #tpu.dot_dimension_numbers<[1], [0], [0], [1], [0, 0, 1, 1], [], []>} : vector<32x8xbf16>, vector<8x128xbf16>, vector<32x128xf32> -> vector<32x128xf32>
    %111 = arith.addf %108, %110 : vector<32x128xf32>
    %112 = vector.extract_strided_slice %111 {offsets = [0, 0], sizes = [24, 128], strides = [1, 1]} : vector<32x128xf32> to vector<24x128xf32>
    %113 = arith.negf %112 : vector<24x128xf32>
    %114 = math.exp %113 : vector<24x128xf32>
    %cst_21 = arith.constant 1.000000e+00 : f32
    %115 = vector.broadcast %cst_21 : f32 to vector<24x128xf32>
    %116 = arith.addf %115, %114 : vector<24x128xf32>
    %117 = arith.divf %115, %116 : vector<24x128xf32>
    %118 = vector.extract_strided_slice %111 {offsets = [24, 0], sizes = [8, 128], strides = [1, 1]} : vector<32x128xf32> to vector<8x128xf32>
    %119 = math.tanh %118 : vector<8x128xf32>
    %120 = vector.extract_strided_slice %117 {offsets = [0, 0], sizes = [8, 128], strides = [1, 1]} : vector<24x128xf32> to vector<8x128xf32>
    %121 = vector.extract_strided_slice %117 {offsets = [8, 0], sizes = [8, 128], strides = [1, 1]} : vector<24x128xf32> to vector<8x128xf32>
    %122 = vector.extract_strided_slice %117 {offsets = [16, 0], sizes = [8, 128], strides = [1, 1]} : vector<24x128xf32> to vector<8x128xf32>
    %123 = arith.mulf %121, %101 : vector<8x128xf32>
    %124 = arith.mulf %120, %119 : vector<8x128xf32>
    %125 = arith.addf %123, %124 : vector<8x128xf32>
    %126 = math.tanh %125 : vector<8x128xf32>
    %127 = arith.mulf %122, %126 : vector<8x128xf32>
    %c5 = arith.constant 5 : index
    %c0_22 = arith.constant 0 : index
    %128 = vector.load %arg0[%c5, %c0_22] : memref<8x128xf32, #tpu.memory_space<vmem>>, vector<1x128xf32>
    %129 = vector.shape_cast %128 : vector<1x128xf32> to vector<1x128xf32>
    %130 = vector.broadcast %129 : vector<1x128xf32> to vector<32x128xf32>
    %131 = arith.mulf %130, %2 : vector<32x128xf32>
    %132 = arith.addf %131, %3 : vector<32x128xf32>
    %133 = arith.truncf %127 : vector<8x128xf32> to vector<8x128xbf16>
    %cst_23 = arith.constant dense<0.000000e+00> : vector<32x128xf32>
    %134 = tpu.matmul %1, %133, %cst_23 {dimension_numbers = #tpu.dot_dimension_numbers<[1], [0], [0], [1], [0, 0, 1, 1], [], []>} : vector<32x8xbf16>, vector<8x128xbf16>, vector<32x128xf32> -> vector<32x128xf32>
    %135 = arith.addf %132, %134 : vector<32x128xf32>
    %136 = vector.extract_strided_slice %135 {offsets = [0, 0], sizes = [24, 128], strides = [1, 1]} : vector<32x128xf32> to vector<24x128xf32>
    %137 = arith.negf %136 : vector<24x128xf32>
    %138 = math.exp %137 : vector<24x128xf32>
    %cst_24 = arith.constant 1.000000e+00 : f32
    %139 = vector.broadcast %cst_24 : f32 to vector<24x128xf32>
    %140 = arith.addf %139, %138 : vector<24x128xf32>
    %141 = arith.divf %139, %140 : vector<24x128xf32>
    %142 = vector.extract_strided_slice %135 {offsets = [24, 0], sizes = [8, 128], strides = [1, 1]} : vector<32x128xf32> to vector<8x128xf32>
    %143 = math.tanh %142 : vector<8x128xf32>
    %144 = vector.extract_strided_slice %141 {offsets = [0, 0], sizes = [8, 128], strides = [1, 1]} : vector<24x128xf32> to vector<8x128xf32>
    %145 = vector.extract_strided_slice %141 {offsets = [8, 0], sizes = [8, 128], strides = [1, 1]} : vector<24x128xf32> to vector<8x128xf32>
    %146 = vector.extract_strided_slice %141 {offsets = [16, 0], sizes = [8, 128], strides = [1, 1]} : vector<24x128xf32> to vector<8x128xf32>
    %147 = arith.mulf %145, %125 : vector<8x128xf32>
    %148 = arith.mulf %144, %143 : vector<8x128xf32>
    %149 = arith.addf %147, %148 : vector<8x128xf32>
    %150 = math.tanh %149 : vector<8x128xf32>
    %151 = arith.mulf %146, %150 : vector<8x128xf32>
    %c6 = arith.constant 6 : index
    %c0_25 = arith.constant 0 : index
    %152 = vector.load %arg0[%c6, %c0_25] : memref<8x128xf32, #tpu.memory_space<vmem>>, vector<1x128xf32>
    %153 = vector.shape_cast %152 : vector<1x128xf32> to vector<1x128xf32>
    %154 = vector.broadcast %153 : vector<1x128xf32> to vector<32x128xf32>
    %155 = arith.mulf %154, %2 : vector<32x128xf32>
    %156 = arith.addf %155, %3 : vector<32x128xf32>
    %157 = arith.truncf %151 : vector<8x128xf32> to vector<8x128xbf16>
    %cst_26 = arith.constant dense<0.000000e+00> : vector<32x128xf32>
    %158 = tpu.matmul %1, %157, %cst_26 {dimension_numbers = #tpu.dot_dimension_numbers<[1], [0], [0], [1], [0, 0, 1, 1], [], []>} : vector<32x8xbf16>, vector<8x128xbf16>, vector<32x128xf32> -> vector<32x128xf32>
    %159 = arith.addf %156, %158 : vector<32x128xf32>
    %160 = vector.extract_strided_slice %159 {offsets = [0, 0], sizes = [24, 128], strides = [1, 1]} : vector<32x128xf32> to vector<24x128xf32>
    %161 = arith.negf %160 : vector<24x128xf32>
    %162 = math.exp %161 : vector<24x128xf32>
    %cst_27 = arith.constant 1.000000e+00 : f32
    %163 = vector.broadcast %cst_27 : f32 to vector<24x128xf32>
    %164 = arith.addf %163, %162 : vector<24x128xf32>
    %165 = arith.divf %163, %164 : vector<24x128xf32>
    %166 = vector.extract_strided_slice %159 {offsets = [24, 0], sizes = [8, 128], strides = [1, 1]} : vector<32x128xf32> to vector<8x128xf32>
    %167 = math.tanh %166 : vector<8x128xf32>
    %168 = vector.extract_strided_slice %165 {offsets = [0, 0], sizes = [8, 128], strides = [1, 1]} : vector<24x128xf32> to vector<8x128xf32>
    %169 = vector.extract_strided_slice %165 {offsets = [8, 0], sizes = [8, 128], strides = [1, 1]} : vector<24x128xf32> to vector<8x128xf32>
    %170 = vector.extract_strided_slice %165 {offsets = [16, 0], sizes = [8, 128], strides = [1, 1]} : vector<24x128xf32> to vector<8x128xf32>
    %171 = arith.mulf %169, %149 : vector<8x128xf32>
    %172 = arith.mulf %168, %167 : vector<8x128xf32>
    %173 = arith.addf %171, %172 : vector<8x128xf32>
    %174 = math.tanh %173 : vector<8x128xf32>
    %175 = arith.mulf %170, %174 : vector<8x128xf32>
    %c7 = arith.constant 7 : index
    %c0_28 = arith.constant 0 : index
    %176 = vector.load %arg0[%c7, %c0_28] : memref<8x128xf32, #tpu.memory_space<vmem>>, vector<1x128xf32>
    %177 = vector.shape_cast %176 : vector<1x128xf32> to vector<1x128xf32>
    %178 = vector.broadcast %177 : vector<1x128xf32> to vector<32x128xf32>
    %179 = arith.mulf %178, %2 : vector<32x128xf32>
    %180 = arith.addf %179, %3 : vector<32x128xf32>
    %181 = arith.truncf %175 : vector<8x128xf32> to vector<8x128xbf16>
    %cst_29 = arith.constant dense<0.000000e+00> : vector<32x128xf32>
    %182 = tpu.matmul %1, %181, %cst_29 {dimension_numbers = #tpu.dot_dimension_numbers<[1], [0], [0], [1], [0, 0, 1, 1], [], []>} : vector<32x8xbf16>, vector<8x128xbf16>, vector<32x128xf32> -> vector<32x128xf32>
    %183 = arith.addf %180, %182 : vector<32x128xf32>
    %184 = vector.extract_strided_slice %183 {offsets = [0, 0], sizes = [24, 128], strides = [1, 1]} : vector<32x128xf32> to vector<24x128xf32>
    %185 = arith.negf %184 : vector<24x128xf32>
    %186 = math.exp %185 : vector<24x128xf32>
    %cst_30 = arith.constant 1.000000e+00 : f32
    %187 = vector.broadcast %cst_30 : f32 to vector<24x128xf32>
    %188 = arith.addf %187, %186 : vector<24x128xf32>
    %189 = arith.divf %187, %188 : vector<24x128xf32>
    %190 = vector.extract_strided_slice %183 {offsets = [24, 0], sizes = [8, 128], strides = [1, 1]} : vector<32x128xf32> to vector<8x128xf32>
    %191 = math.tanh %190 : vector<8x128xf32>
    %192 = vector.extract_strided_slice %189 {offsets = [0, 0], sizes = [8, 128], strides = [1, 1]} : vector<24x128xf32> to vector<8x128xf32>
    %193 = vector.extract_strided_slice %189 {offsets = [8, 0], sizes = [8, 128], strides = [1, 1]} : vector<24x128xf32> to vector<8x128xf32>
    %194 = vector.extract_strided_slice %189 {offsets = [16, 0], sizes = [8, 128], strides = [1, 1]} : vector<24x128xf32> to vector<8x128xf32>
    %195 = arith.mulf %193, %173 : vector<8x128xf32>
    %196 = arith.mulf %192, %191 : vector<8x128xf32>
    %197 = arith.addf %195, %196 : vector<8x128xf32>
    %198 = math.tanh %197 : vector<8x128xf32>
    %199 = arith.mulf %194, %198 : vector<8x128xf32>
    %cst_31 = arith.constant 0.000000e+00 : f32
    %200 = vector.broadcast %cst_31 : f32 to vector<8x128xf32>
    %201 = arith.maximumf %199, %200 : vector<8x128xf32>
    %202 = arith.mulf %201, %4 : vector<8x128xf32>
    %cst_32 = arith.constant dense<0.000000e+00> : vector<128xf32>
    %203 = vector.multi_reduction <add>, %202, %cst_32 [0] : vector<8x128xf32> to vector<128xf32>
    %204 = vector.shape_cast %203 : vector<128xf32> to vector<1x128xf32>
    %205 = arith.addf %204, %5 : vector<1x128xf32>
    %c0_33 = arith.constant 0 : index
    %c0_34 = arith.constant 0 : index
    %206 = vector.load %arg2[%c0_33, %c0_34] : memref<1x128xf32, #tpu.memory_space<vmem>>, vector<1x128xf32>
    tpu.vector_store %arg2[%c0_33, %c0_34], %205 {strides = array<i32>} : memref<1x128xf32, #tpu.memory_space<vmem>>, vector<1x128xf32>,
    return
  }
}

</mosaic_0001>

<llo_original>
// kernel: tpu_custom_call.1
$region0: #{tpu_custom_call.1}
  #allocation0 [shape = 'u32[]', space=smem, size = 0x4, offset = 0x4, fixed_abs, tag = 'smem constant byte address 0x4 - core index']
  #allocation1 [shape = 'u32[72,128]{1,0:T(1,128)}', space=vmem, size = 0x9000, scoped, tag = 'internal scratch']
  %s0 = inlined_call_operand.hbm [shape: f32[8,128], index: 0, kind: input, shape index: {}]
  %s1 = inlined_call_operand.hbm [shape: f32[112,128], index: 1, kind: input, shape index: {}]
  %s2 = inlined_call_operand.hbm [shape: f32[1,128], index: 2, kind: output, shape index: {}]
  %s3 = sld [smem:[#allocation0]]
  $region26: #{tpu_custom_call.1} parent=0
    _
  %s5 = ssub.s32 1, %s3
  %s6 = scalar_select 0, %s5, %s3
  $region1: #{tpu_custom_call.1} parent=0
    #allocation2 [shape = 'u8[4096]{0}', space=vmem, size = 0x1000, scoped, tag = 'input window, operand 0, single buffered']
    #allocation3 [shape = 's32[1]{0}', space=sflag, size = 0x4, scoped, tag = 'scoped memory for tpu_custom_call.1']
    #allocation4 [shape = 's32[1]{0}', space=sflag, size = 0x4, scoped, tag = 'scoped memory for tpu_custom_call.1']
    #allocation5 [shape = 'u8[57344]{0}', space=vmem, size = 0xe000, scoped, tag = 'input window, operand 1, single buffered']
    #allocation6 [shape = 's32[1]{0}', space=sflag, size = 0x4, scoped, tag = 'scoped memory for tpu_custom_call.1']
    #allocation7 [shape = 'u8[512]{0}', space=vmem, size = 0x400, scoped, tag = 'output window, operand 0, single buffered']
    %7 = vsyncpa [#allocation3], 0
    %8 = vsyncpa [#allocation6], 0
    %9 = vsyncpa [#allocation4], 0
    // Predicated region
    $region2: #{tpu_custom_call.1} parent=1 // pred_check
      _
    $region3: #{tpu_custom_call.1} parent=1 // pred_check_branch
      %11 = sbr.rel (0) target = $region5
    $region4: #{tpu_custom_call.1} parent=1 // pred_region
      %13 = vsyncadd [#allocation3], 0
      %s15 = sshll.u32 %s0, 4
      %s16 = int_to_ptr.hbm [resolvable:$true] %s15
      %s17 = sshll.u32 [#allocation2], 4
      %s18 = int_to_ptr.vmem [resolvable:$true] %s17
      %20 = dma.hbm_to_vmem [thread:$0]  %s16, 128, %s18, [#allocation3]
    $region5: #{tpu_custom_call.1} parent=1 // pred_fallthru
      _
    // Predicated region
    $region6: #{tpu_custom_call.1} parent=1 // pred_check
      _
    $region7: #{tpu_custom_call.1} parent=1 // pred_check_branch
      %22 = sbr.rel (0) target = $region9
    $region8: #{tpu_custom_call.1} parent=1 // pred_region
      %24 = vsyncadd [#allocation6], 0
      %s25 = sshll.u32 %s1, 4
      %s26 = int_to_ptr.hbm [resolvable:$true] %s25
      %s27 = sshll.u32 [#allocation5], 4
      %s28 = int_to_ptr.vmem [resolvable:$true] %s27
      %33 = dma.hbm_to_vmem [thread:$0]  %s26, 1792, %s28, [#allocation6], 128, 128, 8
    $region9: #{tpu_custom_call.1} parent=1 // pred_fallthru
      _
    // Predicated region
    $region10: #{tpu_custom_call.1} parent=1 // pred_check
      _
    $region11: #{tpu_custom_call.1} parent=1 // pred_check_branch
      %35 = sbr.rel (0) target = $region13
    $region12: #{tpu_custom_call.1} parent=1 // pred_region
      %37 = dma.done [#allocation3], 128
    $region13: #{tpu_custom_call.1} parent=1 // pred_fallthru
      _
    // Predicated region
    $region14: #{tpu_custom_call.1} parent=1 // pred_check
      _
    $region15: #{tpu_custom_call.1} parent=1 // pred_check_branch
      %39 = sbr.rel (0) target = $region17
    $region16: #{tpu_custom_call.1} parent=1 // pred_region
      %41 = dma.done [#allocation6], 1792
    $region17: #{tpu_custom_call.1} parent=1 // pred_fallthru
      _
    %v43 = vld [vmem:[#allocation5] sm:$0xff]
    %v44 = vld [vmem:[#allocation5 + $0x8] sm:$0xff]
    %v45 = vld [vmem:[#allocation5 + $0x10] sm:$0xff]
    %v46 = vld [vmem:[#allocation5 + $0x18] sm:$0xff]
    %v47 = vpack.c.bf16 %v44, %v43
    %v48 = vpack.c.bf16 %v46, %v45
    %v49 = vld [vmem:[#allocation5 + $0x20] sm:$0xff]
    %v50 = vld [vmem:[#allocation5 + $0x28] sm:$0xff]
    %v51 = vld [vmem:[#allocation5 + $0x30] sm:$0xff]
    %v52 = vld [vmem:[#allocation5 + $0x38] sm:$0xff]
    %v53 = vld [vmem:[#allocation5 + $0x40] sm:$0xff]
    %v54 = vld [vmem:[#allocation5 + $0x48] sm:$0xff]
    %v55 = vld [vmem:[#allocation5 + $0x50] sm:$0xff]
    %v56 = vld [vmem:[#allocation5 + $0x58] sm:$0xff]
    %v57 = vld [vmem:[#allocation5 + $0x60] sm:$0xff]
    %v58 = vld [vmem:[#allocation5 + $0x68] sm:$0x1]
    %v59 = vld [vmem:[#allocation2] sm:$0x1]
    %v60 = vperm.slane %v59, 0
    %v61 = vmul.f32 %v60, %v49
    %v62 = vmul.f32 %v60, %v50
    %v63 = vmul.f32 %v60, %v51
    %v64 = vmul.f32 %v60, %v52
    %v65 = vadd.f32 %v61, %v53
    %v66 = vadd.f32 %v62, %v54
    %v67 = vadd.f32 %v63, %v55
    %v68 = vadd.f32 %v64, %v56
    %vm69 = vcmask 64512
    %v71 = vsel %vm69, %v47, 0
    %v74 = vsel %vm69, %v48, 0
    %vm76 = vcmask 1043456
    %v78 = vsel %vm76, 0, 0
    %80 = vmatpush.bf16.msra.mxu0 0
    %81 = vmatpush.bf16.msra.mxu0 0
    %82 = vmatpush.bf16.msra.mxu0 0
    %83 = vmatpush.bf16.msra.mxu0 0
    %84 = vmatpush.bf16.msra.mxu0 0
    %85 = vmatpush.bf16.msra.mxu0 0
    %86 = vmatpush.bf16.msra.mxu0 0
    %87 = vmatpush.bf16.msra.mxu0 %v78
    %88 = vmatmul.bf16.gmra.mxu0 %v71
    %v89 = vpop.f32.mrf.mxu0
    %v90 = vadd.f32 0.0, %v89
    %v91 = vpop.f32.mrf.mxu0
    %v92 = vadd.f32 0.0, %v91
    %93 = vmatmul.bf16.gmra.mxu0 %v74
    %v94 = vpop.f32.mrf.mxu0
    %v95 = vadd.f32 0.0, %v94
    %v96 = vpop.f32.mrf.mxu0
    %v97 = vadd.f32 0.0, %v96
    %98 = vdwg.mxu0
    %v99 = vadd.f32 %v65, %v90
    %v100 = vadd.f32 %v66, %v92
    %v101 = vadd.f32 %v67, %v95
    %v102 = vadd.f32 %v68, %v97
    %v103 = vxor.u32 %v99, 2147483648
    %v104 = vxor.u32 %v100, 2147483648
    %v105 = vxor.u32 %v101, 2147483648
    %v106 = vmul.f32 %v103, 1.442695
    %v107 = vpow.pop %v106
    %v108 = vmul.f32 %v104, 1.442695
    %v109 = vpow.pop %v108
    %v110 = vmul.f32 %v105, 1.442695
    %v111 = vpow.pop %v110
    %v112 = vadd.f32 %v107, 1.0
    %v113 = vadd.f32 %v109, 1.0
    %v114 = vadd.f32 %v111, 1.0
    %v115 = vrcp.pop %v112
    %v116 = vmul.f32 %v112, %v115
    %v117 = vsub.f32 1.0, %v116
    %v118 = vmul.f32 %v115, %v117
    %v119 = vadd.f32 %v115, %v118
    %vm120 = vweird.f32 %v112
    %vm121 = vweird.f32 %v115
    %vm122 = vmor %vm120, %vm121
    %v123 = vsel %vm122, %v115, %v119
    %v124 = vand.u32 2147483647, %v112
    %vm125 = vcmp.eq.f32.partialorder %v124, 8.507059e+37
    %v126 = vand.u32 %v112, 2147483648
    %v127 = vor.u32 1.1754944e-38, %v126
    %v128 = vsel %vm125, %v127, %v123
    %v129 = vmul.f32 1.0, %v128
    %v130 = vrcp.pop %v113
    %v131 = vmul.f32 %v113, %v130
    %v132 = vsub.f32 1.0, %v131
    %v133 = vmul.f32 %v130, %v132
    %v134 = vadd.f32 %v130, %v133
    %vm135 = vweird.f32 %v113
    %vm136 = vweird.f32 %v130
    %vm137 = vmor %vm135, %vm136
    %v138 = vsel %vm137, %v130, %v134
    %v139 = vand.u32 2147483647, %v113
    %vm140 = vcmp.eq.f32.partialorder %v139, 8.507059e+37
    %v141 = vand.u32 %v113, 2147483648
    %v142 = vor.u32 1.1754944e-38, %v141
    %v143 = vsel %vm140, %v142, %v138
    %v144 = vmul.f32 1.0, %v143
    %v145 = vrcp.pop %v114
    %v146 = vmul.f32 %v114, %v145
    %v147 = vsub.f32 1.0, %v146
    %v148 = vmul.f32 %v145, %v147
    %v149 = vadd.f32 %v145, %v148
    %vm150 = vweird.f32 %v114
    %vm151 = vweird.f32 %v145
    %vm152 = vmor %vm150, %vm151
    %v153 = vsel %vm152, %v145, %v149
    %v154 = vand.u32 2147483647, %v114
    %vm155 = vcmp.eq.f32.partialorder %v154, 8.507059e+37
    %v156 = vand.u32 %v114, 2147483648
    %v157 = vor.u32 1.1754944e-38, %v156
    %v158 = vsel %vm155, %v157, %v153
    %v159 = vmul.f32 1.0, %v158
    %v160 = vtanh.pop %v102
    %v161 = vmul.f32 %v144, 0.0
    %v162 = vmul.f32 %v129, %v160
    %v163 = vadd.f32 %v161, %v162
    %v164 = vtanh.pop %v163
    %v165 = vmul.f32 %v159, %v164
    %v166 = vld [vmem:[#allocation2 + $0x1] sm:$0x1]
    %v167 = vperm.slane %v166, 0
    %v168 = vmul.f32 %v167, %v49
    %v169 = vmul.f32 %v167, %v50
    %v170 = vmul.f32 %v167, %v51
    %v171 = vmul.f32 %v167, %v52
    %v172 = vadd.f32 %v168, %v53
    %v173 = vadd.f32 %v169, %v54
    %v174 = vadd.f32 %v170, %v55
    %v175 = vadd.f32 %v171, %v56
    %v176 = vpack.c.bf16 %v165, %v165
    %v178 = vsel %vm76, %v176, 0
    %180 = vmatpush.bf16.msra.mxu0 0
    %181 = vmatpush.bf16.msra.mxu0 0
    %182 = vmatpush.bf16.msra.mxu0 0
    %183 = vmatpush.bf16.msra.mxu0 0
    %184 = vmatpush.bf16.msra.mxu0 0
    %185 = vmatpush.bf16.msra.mxu0 0
    %186 = vmatpush.bf16.msra.mxu0 0
    %187 = vmatpush.bf16.msra.mxu0 %v178
    %188 = vmatmul.bf16.gmra.mxu0 %v71
    %v189 = vpop.f32.mrf.mxu0
    %v190 = vadd.f32 0.0, %v189
    %v191 = vpop.f32.mrf.mxu0
    %v192 = vadd.f32 0.0, %v191
    %193 = vmatmul.bf16.gmra.mxu0 %v74
    %v194 = vpop.f32.mrf.mxu0
    %v195 = vadd.f32 0.0, %v194
    %v196 = vpop.f32.mrf.mxu0
    %v197 = vadd.f32 0.0, %v196
    %198 = vdwg.mxu0
    %v199 = vadd.f32 %v172, %v190
    %v200 = vadd.f32 %v173, %v192
    %v201 = vadd.f32 %v174, %v195
    %v202 = vadd.f32 %v175, %v197
    %v203 = vxor.u32 %v199, 2147483648
    %v204 = vxor.u32 %v200, 2147483648
    %v205 = vxor.u32 %v201, 2147483648
    %v206 = vmul.f32 %v203, 1.442695
    %v207 = vpow.pop %v206
    %v208 = vmul.f32 %v204, 1.442695
    %v209 = vpow.pop %v208
    %v210 = vmul.f32 %v205, 1.442695
    %v211 = vpow.pop %v210
    %v212 = vadd.f32 %v207, 1.0
    %v213 = vadd.f32 %v209, 1.0
    %v214 = vadd.f32 %v211, 1.0
    %v215 = vrcp.pop %v212
    %v216 = vmul.f32 %v212, %v215
    %v217 = vsub.f32 1.0, %v216
    %v218 = vmul.f32 %v215, %v217
    %v219 = vadd.f32 %v215, %v218
    %vm220 = vweird.f32 %v212
    %vm221 = vweird.f32 %v215
    %vm222 = vmor %vm220, %vm221
    %v223 = vsel %vm222, %v215, %v219
    %v224 = vand.u32 2147483647, %v212
    %vm225 = vcmp.eq.f32.partialorder %v224, 8.507059e+37
    %v226 = vand.u32 %v212, 2147483648
    %v227 = vor.u32 1.1754944e-38, %v226
    %v228 = vsel %vm225, %v227, %v223
    %v229 = vmul.f32 1.0, %v228
    %v230 = vrcp.pop %v213
    %v231 = vmul.f32 %v213, %v230
    %v232 = vsub.f32 1.0, %v231
    %v233 = vmul.f32 %v230, %v232
    %v234 = vadd.f32 %v230, %v233
    %vm235 = vweird.f32 %v213
    %vm236 = vweird.f32 %v230
    %vm237 = vmor %vm235, %vm236
    %v238 = vsel %vm237, %v230, %v234
    %v239 = vand.u32 2147483647, %v213
    %vm240 = vcmp.eq.f32.partialorder %v239, 8.507059e+37
    %v241 = vand.u32 %v213, 2147483648
    %v242 = vor.u32 1.1754944e-38, %v241
    %v243 = vsel %vm240, %v242, %v238
    %v244 = vmul.f32 1.0, %v243
    %v245 = vrcp.pop %v214
    %v246 = vmul.f32 %v214, %v245
    %v247 = vsub.f32 1.0, %v246
    %v248 = vmul.f32 %v245, %v247
    %v249 = vadd.f32 %v245, %v248
    %vm250 = vweird.f32 %v214
    %vm251 = vweird.f32 %v245
    %vm252 = vmor %vm250, %vm251
    %v253 = vsel %vm252, %v245, %v249
    %v254 = vand.u32 2147483647, %v214
    %vm255 = vcmp.eq.f32.partialorder %v254, 8.507059e+37
    %v256 = vand.u32 %v214, 2147483648
    %v257 = vor.u32 1.1754944e-38, %v256
    %v258 = vsel %vm255, %v257, %v253
    %v259 = vmul.f32 1.0, %v258
    %v260 = vtanh.pop %v202
    %v261 = vmul.f32 %v244, %v163
    %v262 = vmul.f32 %v229, %v260
    %v263 = vadd.f32 %v261, %v262
    %v264 = vtanh.pop %v263
    %v265 = vmul.f32 %v259, %v264
    %v266 = vld [vmem:[#allocation2 + $0x2] sm:$0x1]
    %v267 = vperm.slane %v266, 0
    %v268 = vmul.f32 %v267, %v49
    %v269 = vmul.f32 %v267, %v50
    %v270 = vmul.f32 %v267, %v51
    %v271 = vmul.f32 %v267, %v52
    %v272 = vadd.f32 %v268, %v53
    %v273 = vadd.f32 %v269, %v54
    %v274 = vadd.f32 %v270, %v55
    %v275 = vadd.f32 %v271, %v56
    %v276 = vpack.c.bf16 %v265, %v265
    %v278 = vsel %vm76, %v276, 0
    %280 = vmatpush.bf16.msra.mxu0 0
    %281 = vmatpush.bf16.msra.mxu0 0
    %282 = vmatpush.bf16.msra.mxu0 0
    %283 = vmatpush.bf16.msra.mxu0 0
    %284 = vmatpush.bf16.msra.mxu0 0
    %285 = vmatpush.bf16.msra.mxu0 0
    %286 = vmatpush.bf16.msra.mxu0 0
    %287 = vmatpush.bf16.msra.mxu0 %v278
    %288 = vmatmul.bf16.gmra.mxu0 %v71
    %v289 = vpop.f32.mrf.mxu0
    %v290 = vadd.f32 0.0, %v289
    %v291 = vpop.f32.mrf.mxu0
    %v292 = vadd.f32 0.0, %v291
    %293 = vmatmul.bf16.gmra.mxu0 %v74
    %v294 = vpop.f32.mrf.mxu0
    %v295 = vadd.f32 0.0, %v294
    %v296 = vpop.f32.mrf.mxu0
    %v297 = vadd.f32 0.0, %v296
    %298 = vdwg.mxu0
    %v299 = vadd.f32 %v272, %v290
    %v300 = vadd.f32 %v273, %v292
    %v301 = vadd.f32 %v274, %v295
    %v302 = vadd.f32 %v275, %v297
    %v303 = vxor.u32 %v299, 2147483648
    %v304 = vxor.u32 %v300, 2147483648
    %v305 = vxor.u32 %v301, 2147483648
    %v306 = vmul.f32 %v303, 1.442695
    %v307 = vpow.pop %v306
    %v308 = vmul.f32 %v304, 1.442695
    %v309 = vpow.pop %v308
    %v310 = vmul.f32 %v305, 1.442695
    %v311 = vpow.pop %v310
    %v312 = vadd.f32 %v307, 1.0
    %v313 = vadd.f32 %v309, 1.0
    %v314 = vadd.f32 %v311, 1.0
    %v315 = vrcp.pop %v312
    %v316 = vmul.f32 %v312, %v315
    %v317 = vsub.f32 1.0, %v316
    %v318 = vmul.f32 %v315, %v317
    %v319 = vadd.f32 %v315, %v318
    %vm320 = vweird.f32 %v312
    %vm321 = vweird.f32 %v315
    %vm322 = vmor %vm320, %vm321
    %v323 = vsel %vm322, %v315, %v319
    %v324 = vand.u32 2147483647, %v312
    %vm325 = vcmp.eq.f32.partialorder %v324, 8.507059e+37
    %v326 = vand.u32 %v312, 2147483648
    %v327 = vor.u32 1.1754944e-38, %v326
    %v328 = vsel %vm325, %v327, %v323
    %v329 = vmul.f32 1.0, %v328
    %v330 = vrcp.pop %v313
    %v331 = vmul.f32 %v313, %v330
    %v332 = vsub.f32 1.0, %v331
    %v333 = vmul.f32 %v330, %v332
    %v334 = vadd.f32 %v330, %v333
    %vm335 = vweird.f32 %v313
    %vm336 = vweird.f32 %v330
    %vm337 = vmor %vm335, %vm336
    %v338 = vsel %vm337, %v330, %v334
    %v339 = vand.u32 2147483647, %v313
    %vm340 = vcmp.eq.f32.partialorder %v339, 8.507059e+37
    %v341 = vand.u32 %v313, 2147483648
    %v342 = vor.u32 1.1754944e-38, %v341
    %v343 = vsel %vm340, %v342, %v338
    %v344 = vmul.f32 1.0, %v343
    %v345 = vrcp.pop %v314
    %v346 = vmul.f32 %v314, %v345
    %v347 = vsub.f32 1.0, %v346
    %v348 = vmul.f32 %v345, %v347
    %v349 = vadd.f32 %v345, %v348
    %vm350 = vweird.f32 %v314
    %vm351 = vweird.f32 %v345
    %vm352 = vmor %vm350, %vm351
    %v353 = vsel %vm352, %v345, %v349
    %v354 = vand.u32 2147483647, %v314
    %vm355 = vcmp.eq.f32.partialorder %v354, 8.507059e+37
    %v356 = vand.u32 %v314, 2147483648
    %v357 = vor.u32 1.1754944e-38, %v356
    %v358 = vsel %vm355, %v357, %v353
    %v359 = vmul.f32 1.0, %v358
    %v360 = vtanh.pop %v302
    %v361 = vmul.f32 %v344, %v263
    %v362 = vmul.f32 %v329, %v360
    %v363 = vadd.f32 %v361, %v362
    %v364 = vtanh.pop %v363
    %v365 = vmul.f32 %v359, %v364
    %v366 = vld [vmem:[#allocation2 + $0x3] sm:$0x1]
    %v367 = vperm.slane %v366, 0
    %v368 = vmul.f32 %v367, %v49
    %v369 = vmul.f32 %v367, %v50
    %v370 = vmul.f32 %v367, %v51
    %v371 = vmul.f32 %v367, %v52
    %v372 = vadd.f32 %v368, %v53
    %v373 = vadd.f32 %v369, %v54
    %v374 = vadd.f32 %v370, %v55
    %v375 = vadd.f32 %v371, %v56
    %v376 = vpack.c.bf16 %v365, %v365
    %v378 = vsel %vm76, %v376, 0
    %380 = vmatpush.bf16.msra.mxu0 0
    %381 = vmatpush.bf16.msra.mxu0 0
    %382 = vmatpush.bf16.msra.mxu0 0
    %383 = vmatpush.bf16.msra.mxu0 0
    %384 = vmatpush.bf16.msra.mxu0 0
    %385 = vmatpush.bf16.msra.mxu0 0
    %386 = vmatpush.bf16.msra.mxu0 0
    %387 = vmatpush.bf16.msra.mxu0 %v378
    %388 = vmatmul.bf16.gmra.mxu0 %v71
    %v389 = vpop.f32.mrf.mxu0
    %v390 = vadd.f32 0.0, %v389
    %v391 = vpop.f32.mrf.mxu0
    %v392 = vadd.f32 0.0, %v391
    %393 = vmatmul.bf16.gmra.mxu0 %v74
    %v394 = vpop.f32.mrf.mxu0
    %v395 = vadd.f32 0.0, %v394
    %v396 = vpop.f32.mrf.mxu0
    %v397 = vadd.f32 0.0, %v396
    %398 = vdwg.mxu0
    %v399 = vadd.f32 %v372, %v390
    %v400 = vadd.f32 %v373, %v392
    %v401 = vadd.f32 %v374, %v395
    %v402 = vadd.f32 %v375, %v397
    %v403 = vxor.u32 %v399, 2147483648
    %v404 = vxor.u32 %v400, 2147483648
    %v405 = vxor.u32 %v401, 2147483648
    %v406 = vmul.f32 %v403, 1.442695
    %v407 = vpow.pop %v406
    %v408 = vmul.f32 %v404, 1.442695
    %v409 = vpow.pop %v408
    %v410 = vmul.f32 %v405, 1.442695
    %v411 = vpow.pop %v410
    %v412 = vadd.f32 %v407, 1.0
    %v413 = vadd.f32 %v409, 1.0
    %v414 = vadd.f32 %v411, 1.0
    %v415 = vrcp.pop %v412
    %v416 = vmul.f32 %v412, %v415
    %v417 = vsub.f32 1.0, %v416
    %v418 = vmul.f32 %v415, %v417
    %v419 = vadd.f32 %v415, %v418
    %vm420 = vweird.f32 %v412
    %vm421 = vweird.f32 %v415
    %vm422 = vmor %vm420, %vm421
    %v423 = vsel %vm422, %v415, %v419
    %v424 = vand.u32 2147483647, %v412
    %vm425 = vcmp.eq.f32.partialorder %v424, 8.507059e+37
    %v426 = vand.u32 %v412, 2147483648
    %v427 = vor.u32 1.1754944e-38, %v426
    %v428 = vsel %vm425, %v427, %v423
    %v429 = vmul.f32 1.0, %v428
    %v430 = vrcp.pop %v413
    %v431 = vmul.f32 %v413, %v430
    %v432 = vsub.f32 1.0, %v431
    %v433 = vmul.f32 %v430, %v432
    %v434 = vadd.f32 %v430, %v433
    %vm435 = vweird.f32 %v413
    %vm436 = vweird.f32 %v430
    %vm437 = vmor %vm435, %vm436
    %v438 = vsel %vm437, %v430, %v434
    %v439 = vand.u32 2147483647, %v413
    %vm440 = vcmp.eq.f32.partialorder %v439, 8.507059e+37
    %v441 = vand.u32 %v413, 2147483648
    %v442 = vor.u32 1.1754944e-38, %v441
    %v443 = vsel %vm440, %v442, %v438
    %v444 = vmul.f32 1.0, %v443
    %v445 = vrcp.pop %v414
    %v446 = vmul.f32 %v414, %v445
    %v447 = vsub.f32 1.0, %v446
    %v448 = vmul.f32 %v445, %v447
    %v449 = vadd.f32 %v445, %v448
    %vm450 = vweird.f32 %v414
    %vm451 = vweird.f32 %v445
    %vm452 = vmor %vm450, %vm451
    %v453 = vsel %vm452, %v445, %v449
    %v454 = vand.u32 2147483647, %v414
    %vm455 = vcmp.eq.f32.partialorder %v454, 8.507059e+37
    %v456 = vand.u32 %v414, 2147483648
    %v457 = vor.u32 1.1754944e-38, %v456
    %v458 = vsel %vm455, %v457, %v453
    %v459 = vmul.f32 1.0, %v458
    %v460 = vtanh.pop %v402
    %v461 = vmul.f32 %v444, %v363
    %v462 = vmul.f32 %v429, %v460
    %v463 = vadd.f32 %v461, %v462
    %v464 = vtanh.pop %v463
    %v465 = vmul.f32 %v459, %v464
    %v466 = vld [vmem:[#allocation2 + $0x4] sm:$0x1]
    %v467 = vperm.slane %v466, 0
    %v468 = vmul.f32 %v467, %v49
    %v469 = vmul.f32 %v467, %v50
    %v470 = vmul.f32 %v467, %v51
    %v471 = vmul.f32 %v467, %v52
    %v472 = vadd.f32 %v468, %v53
    %v473 = vadd.f32 %v469, %v54
    %v474 = vadd.f32 %v470, %v55
    %v475 = vadd.f32 %v471, %v56
    %v476 = vpack.c.bf16 %v465, %v465
    %v478 = vsel %vm76, %v476, 0
    %480 = vmatpush.bf16.msra.mxu0 0
    %481 = vmatpush.bf16.msra.mxu0 0
    %482 = vmatpush.bf16.msra.mxu0 0
    %483 = vmatpush.bf16.msra.mxu0 0
    %484 = vmatpush.bf16.msra.mxu0 0
    %485 = vmatpush.bf16.msra.mxu0 0
    %486 = vmatpush.bf16.msra.mxu0 0
    %487 = vmatpush.bf16.msra.mxu0 %v478
    %488 = vmatmul.bf16.gmra.mxu0 %v71
    %v489 = vpop.f32.mrf.mxu0
    %v490 = vadd.f32 0.0, %v489
    %v491 = vpop.f32.mrf.mxu0
    %v492 = vadd.f32 0.0, %v491
    %493 = vmatmul.bf16.gmra.mxu0 %v74
    %v494 = vpop.f32.mrf.mxu0
    %v495 = vadd.f32 0.0, %v494
    %v496 = vpop.f32.mrf.mxu0
    %v497 = vadd.f32 0.0, %v496
    %498 = vdwg.mxu0
    %v499 = vadd.f32 %v472, %v490
    %v500 = vadd.f32 %v473, %v492
    %v501 = vadd.f32 %v474, %v495
    %v502 = vadd.f32 %v475, %v497
    %v503 = vxor.u32 %v499, 2147483648
    %v504 = vxor.u32 %v500, 2147483648
    %v505 = vxor.u32 %v501, 2147483648
    %v506 = vmul.f32 %v503, 1.442695
    %v507 = vpow.pop %v506
    %v508 = vmul.f32 %v504, 1.442695
    %v509 = vpow.pop %v508
    %v510 = vmul.f32 %v505, 1.442695
    %v511 = vpow.pop %v510
    %v512 = vadd.f32 %v507, 1.0
    %v513 = vadd.f32 %v509, 1.0
    %v514 = vadd.f32 %v511, 1.0
    %v515 = vrcp.pop %v512
    %v516 = vmul.f32 %v512, %v515
    %v517 = vsub.f32 1.0, %v516
    %v518 = vmul.f32 %v515, %v517
    %v519 = vadd.f32 %v515, %v518
    %vm520 = vweird.f32 %v512
    %vm521 = vweird.f32 %v515
    %vm522 = vmor %vm520, %vm521
    %v523 = vsel %vm522, %v515, %v519
    %v524 = vand.u32 2147483647, %v512
    %vm525 = vcmp.eq.f32.partialorder %v524, 8.507059e+37
    %v526 = vand.u32 %v512, 2147483648
    %v527 = vor.u32 1.1754944e-38, %v526
    %v528 = vsel %vm525, %v527, %v523
    %v529 = vmul.f32 1.0, %v528
    %v530 = vrcp.pop %v513
    %v531 = vmul.f32 %v513, %v530
    %v532 = vsub.f32 1.0, %v531
    %v533 = vmul.f32 %v530, %v532
    %v534 = vadd.f32 %v530, %v533
    %vm535 = vweird.f32 %v513
    %vm536 = vweird.f32 %v530
    %vm537 = vmor %vm535, %vm536
    %v538 = vsel %vm537, %v530, %v534
    %v539 = vand.u32 2147483647, %v513
    %vm540 = vcmp.eq.f32.partialorder %v539, 8.507059e+37
    %v541 = vand.u32 %v513, 2147483648
    %v542 = vor.u32 1.1754944e-38, %v541
    %v543 = vsel %vm540, %v542, %v538
    %v544 = vmul.f32 1.0, %v543
    %v545 = vrcp.pop %v514
    %v546 = vmul.f32 %v514, %v545
    %v547 = vsub.f32 1.0, %v546
    %v548 = vmul.f32 %v545, %v547
    %v549 = vadd.f32 %v545, %v548
    %vm550 = vweird.f32 %v514
    %vm551 = vweird.f32 %v545
    %vm552 = vmor %vm550, %vm551
    %v553 = vsel %vm552, %v545, %v549
    %v554 = vand.u32 2147483647, %v514
    %vm555 = vcmp.eq.f32.partialorder %v554, 8.507059e+37
    %v556 = vand.u32 %v514, 2147483648
    %v557 = vor.u32 1.1754944e-38, %v556
    %v558 = vsel %vm555, %v557, %v553
    %v559 = vmul.f32 1.0, %v558
    %v560 = vtanh.pop %v502
    %v561 = vmul.f32 %v544, %v463
    %v562 = vmul.f32 %v529, %v560
    %v563 = vadd.f32 %v561, %v562
    %v564 = vtanh.pop %v563
    %v565 = vmul.f32 %v559, %v564
    %v566 = vld [vmem:[#allocation2 + $0x5] sm:$0x1]
    %v567 = vperm.slane %v566, 0
    %v568 = vmul.f32 %v567, %v49
    %v569 = vmul.f32 %v567, %v50
    %v570 = vmul.f32 %v567, %v51
    %v571 = vmul.f32 %v567, %v52
    %v572 = vadd.f32 %v568, %v53
    %v573 = vadd.f32 %v569, %v54
    %v574 = vadd.f32 %v570, %v55
    %v575 = vadd.f32 %v571, %v56
    %v576 = vpack.c.bf16 %v565, %v565
    %v578 = vsel %vm76, %v576, 0
    %580 = vmatpush.bf16.msra.mxu0 0
    %581 = vmatpush.bf16.msra.mxu0 0
    %582 = vmatpush.bf16.msra.mxu0 0
    %583 = vmatpush.bf16.msra.mxu0 0
    %584 = vmatpush.bf16.msra.mxu0 0
    %585 = vmatpush.bf16.msra.mxu0 0
    %586 = vmatpush.bf16.msra.mxu0 0
    %587 = vmatpush.bf16.msra.mxu0 %v578
    %588 = vmatmul.bf16.gmra.mxu0 %v71
    %v589 = vpop.f32.mrf.mxu0
    %v590 = vadd.f32 0.0, %v589
    %v591 = vpop.f32.mrf.mxu0
    %v592 = vadd.f32 0.0, %v591
    %593 = vmatmul.bf16.gmra.mxu0 %v74
    %v594 = vpop.f32.mrf.mxu0
    %v595 = vadd.f32 0.0, %v594
    %v596 = vpop.f32.mrf.mxu0
    %v597 = vadd.f32 0.0, %v596
    %598 = vdwg.mxu0
    %v599 = vadd.f32 %v572, %v590
    %v600 = vadd.f32 %v573, %v592
    %v601 = vadd.f32 %v574, %v595
    %v602 = vadd.f32 %v575, %v597
    %v603 = vxor.u32 %v599, 2147483648
    %v604 = vxor.u32 %v600, 2147483648
    %v605 = vxor.u32 %v601, 2147483648
    %v606 = vmul.f32 %v603, 1.442695
    %v607 = vpow.pop %v606
    %v608 = vmul.f32 %v604, 1.442695
    %v609 = vpow.pop %v608
    %v610 = vmul.f32 %v605, 1.442695
    %v611 = vpow.pop %v610
    %v612 = vadd.f32 %v607, 1.0
    %v613 = vadd.f32 %v609, 1.0
    %v614 = vadd.f32 %v611, 1.0
    %v615 = vrcp.pop %v612
    %v616 = vmul.f32 %v612, %v615
    %v617 = vsub.f32 1.0, %v616
    %v618 = vmul.f32 %v615, %v617
    %v619 = vadd.f32 %v615, %v618
    %vm620 = vweird.f32 %v612
    %vm621 = vweird.f32 %v615
    %vm622 = vmor %vm620, %vm621
    %v623 = vsel %vm622, %v615, %v619
    %v624 = vand.u32 2147483647, %v612
    %vm625 = vcmp.eq.f32.partialorder %v624, 8.507059e+37
    %v626 = vand.u32 %v612, 2147483648
    %v627 = vor.u32 1.1754944e-38, %v626
    %v628 = vsel %vm625, %v627, %v623
    %v629 = vmul.f32 1.0, %v628
    %v630 = vrcp.pop %v613
    %v631 = vmul.f32 %v613, %v630
    %v632 = vsub.f32 1.0, %v631
    %v633 = vmul.f32 %v630, %v632
    %v634 = vadd.f32 %v630, %v633
    %vm635 = vweird.f32 %v613
    %vm636 = vweird.f32 %v630
    %vm637 = vmor %vm635, %vm636
    %v638 = vsel %vm637, %v630, %v634
    %v639 = vand.u32 2147483647, %v613
    %vm640 = vcmp.eq.f32.partialorder %v639, 8.507059e+37
    %v641 = vand.u32 %v613, 2147483648
    %v642 = vor.u32 1.1754944e-38, %v641
    %v643 = vsel %vm640, %v642, %v638
    %v644 = vmul.f32 1.0, %v643
    %v645 = vrcp.pop %v614
    %v646 = vmul.f32 %v614, %v645
    %v647 = vsub.f32 1.0, %v646
    %v648 = vmul.f32 %v645, %v647
    %v649 = vadd.f32 %v645, %v648
    %vm650 = vweird.f32 %v614
    %vm651 = vweird.f32 %v645
    %vm652 = vmor %vm650, %vm651
    %v653 = vsel %vm652, %v645, %v649
    %v654 = vand.u32 2147483647, %v614
    %vm655 = vcmp.eq.f32.partialorder %v654, 8.507059e+37
    %v656 = vand.u32 %v614, 2147483648
    %v657 = vor.u32 1.1754944e-38, %v656
    %v658 = vsel %vm655, %v657, %v653
    %v659 = vmul.f32 1.0, %v658
    %v660 = vtanh.pop %v602
    %v661 = vmul.f32 %v644, %v563
    %v662 = vmul.f32 %v629, %v660
    %v663 = vadd.f32 %v661, %v662
    %v664 = vtanh.pop %v663
    %v665 = vmul.f32 %v659, %v664
    %v666 = vld [vmem:[#allocation2 + $0x6] sm:$0x1]
    %v667 = vperm.slane %v666, 0
    %v668 = vmul.f32 %v667, %v49
    %v669 = vmul.f32 %v667, %v50
    %v670 = vmul.f32 %v667, %v51
    %v671 = vmul.f32 %v667, %v52
    %v672 = vadd.f32 %v668, %v53
    %v673 = vadd.f32 %v669, %v54
    %v674 = vadd.f32 %v670, %v55
    %v675 = vadd.f32 %v671, %v56
    %v676 = vpack.c.bf16 %v665, %v665
    %v678 = vsel %vm76, %v676, 0
    %680 = vmatpush.bf16.msra.mxu0 0
    %681 = vmatpush.bf16.msra.mxu0 0
    %682 = vmatpush.bf16.msra.mxu0 0
    %683 = vmatpush.bf16.msra.mxu0 0
    %684 = vmatpush.bf16.msra.mxu0 0
    %685 = vmatpush.bf16.msra.mxu0 0
    %686 = vmatpush.bf16.msra.mxu0 0
    %687 = vmatpush.bf16.msra.mxu0 %v678
    %688 = vmatmul.bf16.gmra.mxu0 %v71
    %v689 = vpop.f32.mrf.mxu0
    %v690 = vadd.f32 0.0, %v689
    %v691 = vpop.f32.mrf.mxu0
    %v692 = vadd.f32 0.0, %v691
    %693 = vmatmul.bf16.gmra.mxu0 %v74
    %v694 = vpop.f32.mrf.mxu0
    %v695 = vadd.f32 0.0, %v694
    %v696 = vpop.f32.mrf.mxu0
    %v697 = vadd.f32 0.0, %v696
    %698 = vdwg.mxu0
    %v699 = vadd.f32 %v672, %v690
    %v700 = vadd.f32 %v673, %v692
    %v701 = vadd.f32 %v674, %v695
    %v702 = vadd.f32 %v675, %v697
    %v703 = vxor.u32 %v699, 2147483648
    %v704 = vxor.u32 %v700, 2147483648
    %v705 = vxor.u32 %v701, 2147483648
    %v706 = vmul.f32 %v703, 1.442695
    %v707 = vpow.pop %v706
    %v708 = vmul.f32 %v704, 1.442695
    %v709 = vpow.pop %v708
    %v710 = vmul.f32 %v705, 1.442695
    %v711 = vpow.pop %v710
    %v712 = vadd.f32 %v707, 1.0
    %v713 = vadd.f32 %v709, 1.0
    %v714 = vadd.f32 %v711, 1.0
    %v715 = vrcp.pop %v712
    %v716 = vmul.f32 %v712, %v715
    %v717 = vsub.f32 1.0, %v716
    %v718 = vmul.f32 %v715, %v717
    %v719 = vadd.f32 %v715, %v718
    %vm720 = vweird.f32 %v712
    %vm721 = vweird.f32 %v715
    %vm722 = vmor %vm720, %vm721
    %v723 = vsel %vm722, %v715, %v719
    %v724 = vand.u32 2147483647, %v712
    %vm725 = vcmp.eq.f32.partialorder %v724, 8.507059e+37
    %v726 = vand.u32 %v712, 2147483648
    %v727 = vor.u32 1.1754944e-38, %v726
    %v728 = vsel %vm725, %v727, %v723
    %v729 = vmul.f32 1.0, %v728
    %v730 = vrcp.pop %v713
    %v731 = vmul.f32 %v713, %v730
    %v732 = vsub.f32 1.0, %v731
    %v733 = vmul.f32 %v730, %v732
    %v734 = vadd.f32 %v730, %v733
    %vm735 = vweird.f32 %v713
    %vm736 = vweird.f32 %v730
    %vm737 = vmor %vm735, %vm736
    %v738 = vsel %vm737, %v730, %v734
    %v739 = vand.u32 2147483647, %v713
    %vm740 = vcmp.eq.f32.partialorder %v739, 8.507059e+37
    %v741 = vand.u32 %v713, 2147483648
    %v742 = vor.u32 1.1754944e-38, %v741
    %v743 = vsel %vm740, %v742, %v738
    %v744 = vmul.f32 1.0, %v743
    %v745 = vrcp.pop %v714
    %v746 = vmul.f32 %v714, %v745
    %v747 = vsub.f32 1.0, %v746
    %v748 = vmul.f32 %v745, %v747
    %v749 = vadd.f32 %v745, %v748
    %vm750 = vweird.f32 %v714
    %vm751 = vweird.f32 %v745
    %vm752 = vmor %vm750, %vm751
    %v753 = vsel %vm752, %v745, %v749
    %v754 = vand.u32 2147483647, %v714
    %vm755 = vcmp.eq.f32.partialorder %v754, 8.507059e+37
    %v756 = vand.u32 %v714, 2147483648
    %v757 = vor.u32 1.1754944e-38, %v756
    %v758 = vsel %vm755, %v757, %v753
    %v759 = vmul.f32 1.0, %v758
    %v760 = vtanh.pop %v702
    %v761 = vmul.f32 %v744, %v663
    %v762 = vmul.f32 %v729, %v760
    %v763 = vadd.f32 %v761, %v762
    %v764 = vtanh.pop %v763
    %v765 = vmul.f32 %v759, %v764
    %v766 = vld [vmem:[#allocation2 + $0x7] sm:$0x1]
    %v767 = vperm.slane %v766, 0
    %v768 = vmul.f32 %v767, %v49
    %v769 = vmul.f32 %v767, %v50
    %v770 = vmul.f32 %v767, %v51
    %v771 = vmul.f32 %v767, %v52
    %v772 = vadd.f32 %v768, %v53
    %v773 = vadd.f32 %v769, %v54
    %v774 = vadd.f32 %v770, %v55
    %v775 = vadd.f32 %v771, %v56
    %v776 = vpack.c.bf16 %v765, %v765
    %v778 = vsel %vm76, %v776, 0
    %780 = vmatpush.bf16.msra.mxu0 0
    %781 = vmatpush.bf16.msra.mxu0 0
    %782 = vmatpush.bf16.msra.mxu0 0
    %783 = vmatpush.bf16.msra.mxu0 0
    %784 = vmatpush.bf16.msra.mxu0 0
    %785 = vmatpush.bf16.msra.mxu0 0
    %786 = vmatpush.bf16.msra.mxu0 0
    %787 = vmatpush.bf16.msra.mxu0 %v778
    %788 = vmatmul.bf16.gmra.mxu0 %v71
    %v789 = vpop.f32.mrf.mxu0
    %v790 = vadd.f32 0.0, %v789
    %v791 = vpop.f32.mrf.mxu0
    %v792 = vadd.f32 0.0, %v791
    %793 = vmatmul.bf16.gmra.mxu0 %v74
    %v794 = vpop.f32.mrf.mxu0
    %v795 = vadd.f32 0.0, %v794
    %v796 = vpop.f32.mrf.mxu0
    %v797 = vadd.f32 0.0, %v796
    %798 = vdwg.mxu0
    %v799 = vadd.f32 %v772, %v790
    %v800 = vadd.f32 %v773, %v792
    %v801 = vadd.f32 %v774, %v795
    %v802 = vadd.f32 %v775, %v797
    %v803 = vxor.u32 %v799, 2147483648
    %v804 = vxor.u32 %v800, 2147483648
    %v805 = vxor.u32 %v801, 2147483648
    %v806 = vmul.f32 %v803, 1.442695
    %v807 = vpow.pop %v806
    %v808 = vmul.f32 %v804, 1.442695
    %v809 = vpow.pop %v808
    %v810 = vmul.f32 %v805, 1.442695
    %v811 = vpow.pop %v810
    %v812 = vadd.f32 %v807, 1.0
    %v813 = vadd.f32 %v809, 1.0
    %v814 = vadd.f32 %v811, 1.0
    %v815 = vrcp.pop %v812
    %v816 = vmul.f32 %v812, %v815
    %v817 = vsub.f32 1.0, %v816
    %v818 = vmul.f32 %v815, %v817
    %v819 = vadd.f32 %v815, %v818
    %vm820 = vweird.f32 %v812
    %vm821 = vweird.f32 %v815
    %vm822 = vmor %vm820, %vm821
    %v823 = vsel %vm822, %v815, %v819
    %v824 = vand.u32 2147483647, %v812
    %vm825 = vcmp.eq.f32.partialorder %v824, 8.507059e+37
    %v826 = vand.u32 %v812, 2147483648
    %v827 = vor.u32 1.1754944e-38, %v826
    %v828 = vsel %vm825, %v827, %v823
    %v829 = vmul.f32 1.0, %v828
    %v830 = vrcp.pop %v813
    %v831 = vmul.f32 %v813, %v830
    %v832 = vsub.f32 1.0, %v831
    %v833 = vmul.f32 %v830, %v832
    %v834 = vadd.f32 %v830, %v833
    %vm835 = vweird.f32 %v813
    %vm836 = vweird.f32 %v830
    %vm837 = vmor %vm835, %vm836
    %v838 = vsel %vm837, %v830, %v834
    %v839 = vand.u32 2147483647, %v813
    %vm840 = vcmp.eq.f32.partialorder %v839, 8.507059e+37
    %v841 = vand.u32 %v813, 2147483648
    %v842 = vor.u32 1.1754944e-38, %v841
    %v843 = vsel %vm840, %v842, %v838
    %v844 = vmul.f32 1.0, %v843
    %v845 = vrcp.pop %v814
    %v846 = vmul.f32 %v814, %v845
    %v847 = vsub.f32 1.0, %v846
    %v848 = vmul.f32 %v845, %v847
    %v849 = vadd.f32 %v845, %v848
    %vm850 = vweird.f32 %v814
    %vm851 = vweird.f32 %v845
    %vm852 = vmor %vm850, %vm851
    %v853 = vsel %vm852, %v845, %v849
    %v854 = vand.u32 2147483647, %v814
    %vm855 = vcmp.eq.f32.partialorder %v854, 8.507059e+37
    %v856 = vand.u32 %v814, 2147483648
    %v857 = vor.u32 1.1754944e-38, %v856
    %v858 = vsel %vm855, %v857, %v853
    %v859 = vmul.f32 1.0, %v858
    %v860 = vtanh.pop %v802
    %v861 = vmul.f32 %v844, %v763
    %v862 = vmul.f32 %v829, %v860
    %v863 = vadd.f32 %v861, %v862
    %v864 = vtanh.pop %v863
    %v865 = vmul.f32 %v859, %v864
    %v866 = vmax.f32 %v865, 0.0
    %v867 = vmul.f32 %v866, %v57
    %v868 = vrot.slane %v867, 4
    %v869 = vadd.f32 %v867, %v868
    %v870 = vrot.slane %v869, 2
    %v871 = vadd.f32 %v869, %v870
    %v872 = vrot.slane %v871, 1
    %v873 = vadd.f32 %v871, %v872
    %v874 = vadd.f32 %v873, %v58
    %875 = vst [vmem:[#allocation7] sm:$0x1] %v874
    // Predicated region
    $region18: #{tpu_custom_call.1} parent=1 // pred_check
      _
    $region19: #{tpu_custom_call.1} parent=1 // pred_check_branch
      %877 = sbr.rel (0) target = $region21
    $region20: #{tpu_custom_call.1} parent=1 // pred_region
      %879 = vsyncadd [#allocation4], 0
      %s881 = sshll.u32 [#allocation7], 4
      %s882 = int_to_ptr.vmem [resolvable:$true] %s881
      %s883 = sshll.u32 %s2, 4
      %s884 = int_to_ptr.hbm [resolvable:$true] %s883
      %886 = dma.vmem_to_hbm [thread:$0]  %s882, 16, %s884, [#allocation4]
    $region21: #{tpu_custom_call.1} parent=1 // pred_fallthru
      _
    // Predicated region
    $region22: #{tpu_custom_call.1} parent=1 // pred_check
      _
    $region23: #{tpu_custom_call.1} parent=1 // pred_check_branch
      %888 = sbr.rel (0) target = $region25
    $region24: #{tpu_custom_call.1} parent=1 // pred_region
      %890 = dma.done [#allocation4], 16
    $region25: #{tpu_custom_call.1} parent=1 // pred_fallthru
      _
    %891 = vsyncpa [#allocation3], 1
    %892 = vsyncpa [#allocation6], 1
    %893 = vsyncpa [#allocation4], 1

</llo_original>
